<compile_context>
chip_gen: v5e
topology: v5e:2x2
jax: 0.10.0
libtpu: 0.0.40
codegen_flags: <defaults>
</compile_context>

<pallas_src>
import jax
import jax.numpy as jnp
from jax.experimental import pallas as pl
from jax.experimental.pallas import tpu as pltpu

K = 8  # patch size


def _merge_kernel(p_ref, o_ref):
    # p_ref: (th, wb, 64) -- `th` whole patch-rows, each 8x8 patch flattened to 64 lanes.
    # o_ref: (th, 8, W)   -- the corresponding th*8 image rows (contiguous in HBM).
    th, _, width = o_ref.shape
    for r in range(K):  # static unroll over the intra-patch row
        # lanes [r*8:(r+1)*8] of every patch form image row 8*h + r
        o_ref[:, r, :] = p_ref[:, :, r * K:(r + 1) * K].reshape(th, width)


def _round_up(x, m):
    return (x + m - 1) // m * m


def _pick_row_chunk(hb, wb, width, itemsize, max_rows=None,
                    budget_bytes=20 * 1024 * 1024):
    """Largest divisor of hb whose double-buffered padded VMEM tiles fit."""
    sub = {4: 8, 2: 16, 1: 32}.get(itemsize, 8)  # min sublane tile per dtype

    def fits(th):
        # input tile (th, wb, 64): sublanes pad to `sub`, lanes 64 -> 128
        in_bytes = th * _round_up(wb, sub) * 128 * itemsize
        # output tile (th, 8, W): sublanes 8 -> `sub`, lanes pad to 128
        out_bytes = th * _round_up(K, sub) * _round_up(width, 128) * itemsize
        return 2 * (in_bytes + out_bytes) <= budget_bytes  # double-buffered

    cap = hb if max_rows is None else min(hb, max_rows)
    best = 1
    for d in range(1, cap + 1):
        if hb % d == 0 and fits(d):
            best = d
    return best


def block_merging(patches, height, width, *, block_rows=None):
    """patches: (B, H*W//64, 8, 8) -> image: (B, H, W). Pure data movement."""
    B = patches.shape[0]
    hb, wb = height // K, width // K
    itemsize = jnp.dtype(patches.dtype).itemsize

    # Free views (no data movement):
    #   input : (B, hb, wb, 64) -- each patch flattened along the lane dim
    #   output: (B, hb, 8, W)   -- identical memory layout to (B, H, W)
    patches4 = patches.reshape(B, hb, wb, K * K)

    th = _pick_row_chunk(hb, wb, width, itemsize, max_rows=block_rows)
    n_hc = hb // th
    grid = (B, n_hc)  # (batch, patch-row chunk); both axes independent

    in_spec = pl.BlockSpec(
        (pl.Squeezed(), th, wb, K * K),
        lambda b, hc: (b, hc, 0, 0),
    )
    out_spec = pl.BlockSpec(
        (pl.Squeezed(), th, K, width),
        lambda b, hc: (b, hc, 0, 0),
    )

    out4 = pl.pallas_call(
        _merge_kernel,
        out_shape=jax.ShapeDtypeStruct((B, hb, K, width), patches.dtype),
        grid=grid,
        in_specs=[in_spec],
        out_specs=out_spec,
        compiler_params=pltpu.CompilerParams(
            dimension_semantics=("parallel", "parallel"),
            vmem_limit_bytes=32 * 1024 * 1024,
        ),
        cost_estimate=pl.CostEstimate(
            flops=0,
            transcendentals=0,
            bytes_accessed=2 * B * height * width * itemsize,
        ),
    )(patches4)
    return out4.reshape(B, height, width)


def _reference(patches, height, width):
    B = patches.shape[0]
    x = patches.reshape(B, height // K, width // K, K, K)
    x = jnp.transpose(x, (0, 1, 3, 2, 4))
    return x.reshape(B, height, width)


if __name__ == "__main__":
    key = jax.random.PRNGKey(0)

    cases = [
        (2, 16, 16, jnp.float32, None),     # tiny sanity case (original test)
        (1, 64, 224, jnp.float32, None),    # W not a multiple of 128
        (1, 128, 128, jnp.bfloat16, None),  # narrow dtype (sublane packing)
        (2, 64, 64, jnp.float32, 2),        # forces a multi-block grid (n_hc > 1)
    ]
    for i, (B, H, W, dtype, block_rows) in enumerate(cases):
        key, sub = jax.random.split(key)
        patches = jax.random.normal(
            sub, (B, (H * W) // 64, K, K), dtype=jnp.float32
        ).astype(dtype)

        out = jax.block_until_ready(
            block_merging(patches, H, W, block_rows=block_rows)
        )
        ref = _reference(patches, H, W)

        assert out.shape == (B, H, W), f"bad shape in case {i}"
        assert jnp.array_equal(out, ref), f"mismatch vs reference in case {i}"

    print("KERNEL_OK")
</pallas_src>

<mosaic_0001>
module attributes {stable_mosaic.version = 11 : i64} {
  func.func @_merge_kernel(%arg0: i32, %arg1: i32, %arg2: memref<1x2x2x64xf32, #tpu.memory_space<vmem>>, %arg3: memref<1x2x8x16xf32, #tpu.memory_space<vmem>>) attributes {dimension_semantics = [#tpu.dimension_semantics<parallel>, #tpu.dimension_semantics<parallel>], iteration_bounds = array<i64: 2, 1>, scalar_prefetch = 0 : i64, scratch_operands = 0 : i64, tpu.core_type = #tpu.core_type<tc>, window_params = [{transform_indices = @transform_0, window_bounds = array<i64: 1, 2, 2, 64>}, {transform_indices = @transform_1, window_bounds = array<i64: 1, 2, 8, 16>}]} {
    %c0 = arith.constant 0 : index
    %c0_0 = arith.constant 0 : index
    %c0_1 = arith.constant 0 : index
    %c0_2 = arith.constant 0 : index
    %0 = vector.load %arg2[%c0, %c0_0, %c0_1, %c0_2] : memref<1x2x2x64xf32, #tpu.memory_space<vmem>>, vector<1x2x2x8xf32>
    %1 = vector.shape_cast %0 : vector<1x2x2x8xf32> to vector<2x2x8xf32>
    %2 = vector.shape_cast %1 : vector<2x2x8xf32> to vector<2x16xf32>
    %c0_3 = arith.constant 0 : index
    %c0_4 = arith.constant 0 : index
    %c0_5 = arith.constant 0 : index
    %c0_6 = arith.constant 0 : index
    %3 = vector.load %arg3[%c0_3, %c0_4, %c0_5, %c0_6] : memref<1x2x8x16xf32, #tpu.memory_space<vmem>>, vector<1x2x1x16xf32>
    %4 = vector.shape_cast %3 : vector<1x2x1x16xf32> to vector<2x16xf32>
    %5 = vector.shape_cast %2 : vector<2x16xf32> to vector<1x2x1x16xf32>
    tpu.vector_store %arg3[%c0_3, %c0_4, %c0_5, %c0_6], %5 {strides = array<i32>} : memref<1x2x8x16xf32, #tpu.memory_space<vmem>>, vector<1x2x1x16xf32>,
    %c0_7 = arith.constant 0 : index
    %c0_8 = arith.constant 0 : index
    %c0_9 = arith.constant 0 : index
    %c8 = arith.constant 8 : index
    %6 = vector.load %arg2[%c0_7, %c0_8, %c0_9, %c8] : memref<1x2x2x64xf32, #tpu.memory_space<vmem>>, vector<1x2x2x8xf32>
    %7 = vector.shape_cast %6 : vector<1x2x2x8xf32> to vector<2x2x8xf32>
    %8 = vector.shape_cast %7 : vector<2x2x8xf32> to vector<2x16xf32>
    %c0_10 = arith.constant 0 : index
    %c0_11 = arith.constant 0 : index
    %c1 = arith.constant 1 : index
    %c0_12 = arith.constant 0 : index
    %9 = vector.load %arg3[%c0_10, %c0_11, %c1, %c0_12] : memref<1x2x8x16xf32, #tpu.memory_space<vmem>>, vector<1x2x1x16xf32>
    %10 = vector.shape_cast %9 : vector<1x2x1x16xf32> to vector<2x16xf32>
    %11 = vector.shape_cast %8 : vector<2x16xf32> to vector<1x2x1x16xf32>
    tpu.vector_store %arg3[%c0_10, %c0_11, %c1, %c0_12], %11 {strides = array<i32>} : memref<1x2x8x16xf32, #tpu.memory_space<vmem>>, vector<1x2x1x16xf32>,
    %c0_13 = arith.constant 0 : index
    %c0_14 = arith.constant 0 : index
    %c0_15 = arith.constant 0 : index
    %c16 = arith.constant 16 : index
    %12 = vector.load %arg2[%c0_13, %c0_14, %c0_15, %c16] : memref<1x2x2x64xf32, #tpu.memory_space<vmem>>, vector<1x2x2x8xf32>
    %13 = vector.shape_cast %12 : vector<1x2x2x8xf32> to vector<2x2x8xf32>
    %14 = vector.shape_cast %13 : vector<2x2x8xf32> to vector<2x16xf32>
    %c0_16 = arith.constant 0 : index
    %c0_17 = arith.constant 0 : index
    %c2 = arith.constant 2 : index
    %c0_18 = arith.constant 0 : index
    %15 = vector.load %arg3[%c0_16, %c0_17, %c2, %c0_18] : memref<1x2x8x16xf32, #tpu.memory_space<vmem>>, vector<1x2x1x16xf32>
    %16 = vector.shape_cast %15 : vector<1x2x1x16xf32> to vector<2x16xf32>
    %17 = vector.shape_cast %14 : vector<2x16xf32> to vector<1x2x1x16xf32>
    tpu.vector_store %arg3[%c0_16, %c0_17, %c2, %c0_18], %17 {strides = array<i32>} : memref<1x2x8x16xf32, #tpu.memory_space<vmem>>, vector<1x2x1x16xf32>,
    %c0_19 = arith.constant 0 : index
    %c0_20 = arith.constant 0 : index
    %c0_21 = arith.constant 0 : index
    %c24 = arith.constant 24 : index
    %18 = vector.load %arg2[%c0_19, %c0_20, %c0_21, %c24] : memref<1x2x2x64xf32, #tpu.memory_space<vmem>>, vector<1x2x2x8xf32>
    %19 = vector.shape_cast %18 : vector<1x2x2x8xf32> to vector<2x2x8xf32>
    %20 = vector.shape_cast %19 : vector<2x2x8xf32> to vector<2x16xf32>
    %c0_22 = arith.constant 0 : index
    %c0_23 = arith.constant 0 : index
    %c3 = arith.constant 3 : index
    %c0_24 = arith.constant 0 : index
    %21 = vector.load %arg3[%c0_22, %c0_23, %c3, %c0_24] : memref<1x2x8x16xf32, #tpu.memory_space<vmem>>, vector<1x2x1x16xf32>
    %22 = vector.shape_cast %21 : vector<1x2x1x16xf32> to vector<2x16xf32>
    %23 = vector.shape_cast %20 : vector<2x16xf32> to vector<1x2x1x16xf32>
    tpu.vector_store %arg3[%c0_22, %c0_23, %c3, %c0_24], %23 {strides = array<i32>} : memref<1x2x8x16xf32, #tpu.memory_space<vmem>>, vector<1x2x1x16xf32>,
    %c0_25 = arith.constant 0 : index
    %c0_26 = arith.constant 0 : index
    %c0_27 = arith.constant 0 : index
    %c32 = arith.constant 32 : index
    %24 = vector.load %arg2[%c0_25, %c0_26, %c0_27, %c32] : memref<1x2x2x64xf32, #tpu.memory_space<vmem>>, vector<1x2x2x8xf32>
    %25 = vector.shape_cast %24 : vector<1x2x2x8xf32> to vector<2x2x8xf32>
    %26 = vector.shape_cast %25 : vector<2x2x8xf32> to vector<2x16xf32>
    %c0_28 = arith.constant 0 : index
    %c0_29 = arith.constant 0 : index
    %c4 = arith.constant 4 : index
    %c0_30 = arith.constant 0 : index
    %27 = vector.load %arg3[%c0_28, %c0_29, %c4, %c0_30] : memref<1x2x8x16xf32, #tpu.memory_space<vmem>>, vector<1x2x1x16xf32>
    %28 = vector.shape_cast %27 : vector<1x2x1x16xf32> to vector<2x16xf32>
    %29 = vector.shape_cast %26 : vector<2x16xf32> to vector<1x2x1x16xf32>
    tpu.vector_store %arg3[%c0_28, %c0_29, %c4, %c0_30], %29 {strides = array<i32>} : memref<1x2x8x16xf32, #tpu.memory_space<vmem>>, vector<1x2x1x16xf32>,
    %c0_31 = arith.constant 0 : index
    %c0_32 = arith.constant 0 : index
    %c0_33 = arith.constant 0 : index
    %c40 = arith.constant 40 : index
    %30 = vector.load %arg2[%c0_31, %c0_32, %c0_33, %c40] : memref<1x2x2x64xf32, #tpu.memory_space<vmem>>, vector<1x2x2x8xf32>
    %31 = vector.shape_cast %30 : vector<1x2x2x8xf32> to vector<2x2x8xf32>
    %32 = vector.shape_cast %31 : vector<2x2x8xf32> to vector<2x16xf32>
    %c0_34 = arith.constant 0 : index
    %c0_35 = arith.constant 0 : index
    %c5 = arith.constant 5 : index
    %c0_36 = arith.constant 0 : index
    %33 = vector.load %arg3[%c0_34, %c0_35, %c5, %c0_36] : memref<1x2x8x16xf32, #tpu.memory_space<vmem>>, vector<1x2x1x16xf32>
    %34 = vector.shape_cast %33 : vector<1x2x1x16xf32> to vector<2x16xf32>
    %35 = vector.shape_cast %32 : vector<2x16xf32> to vector<1x2x1x16xf32>
    tpu.vector_store %arg3[%c0_34, %c0_35, %c5, %c0_36], %35 {strides = array<i32>} : memref<1x2x8x16xf32, #tpu.memory_space<vmem>>, vector<1x2x1x16xf32>,
    %c0_37 = arith.constant 0 : index
    %c0_38 = arith.constant 0 : index
    %c0_39 = arith.constant 0 : index
    %c48 = arith.constant 48 : index
    %36 = vector.load %arg2[%c0_37, %c0_38, %c0_39, %c48] : memref<1x2x2x64xf32, #tpu.memory_space<vmem>>, vector<1x2x2x8xf32>
    %37 = vector.shape_cast %36 : vector<1x2x2x8xf32> to vector<2x2x8xf32>
    %38 = vector.shape_cast %37 : vector<2x2x8xf32> to vector<2x16xf32>
    %c0_40 = arith.constant 0 : index
    %c0_41 = arith.constant 0 : index
    %c6 = arith.constant 6 : index
    %c0_42 = arith.constant 0 : index
    %39 = vector.load %arg3[%c0_40, %c0_41, %c6, %c0_42] : memref<1x2x8x16xf32, #tpu.memory_space<vmem>>, vector<1x2x1x16xf32>
    %40 = vector.shape_cast %39 : vector<1x2x1x16xf32> to vector<2x16xf32>
    %41 = vector.shape_cast %38 : vector<2x16xf32> to vector<1x2x1x16xf32>
    tpu.vector_store %arg3[%c0_40, %c0_41, %c6, %c0_42], %41 {strides = array<i32>} : memref<1x2x8x16xf32, #tpu.memory_space<vmem>>, vector<1x2x1x16xf32>,
    %c0_43 = arith.constant 0 : index
    %c0_44 = arith.constant 0 : index
    %c0_45 = arith.constant 0 : index
    %c56 = arith.constant 56 : index
    %42 = vector.load %arg2[%c0_43, %c0_44, %c0_45, %c56] : memref<1x2x2x64xf32, #tpu.memory_space<vmem>>, vector<1x2x2x8xf32>
    %43 = vector.shape_cast %42 : vector<1x2x2x8xf32> to vector<2x2x8xf32>
    %44 = vector.shape_cast %43 : vector<2x2x8xf32> to vector<2x16xf32>
    %c0_46 = arith.constant 0 : index
    %c0_47 = arith.constant 0 : index
    %c7 = arith.constant 7 : index
    %c0_48 = arith.constant 0 : index
    %45 = vector.load %arg3[%c0_46, %c0_47, %c7, %c0_48] : memref<1x2x8x16xf32, #tpu.memory_space<vmem>>, vector<1x2x1x16xf32>
    %46 = vector.shape_cast %45 : vector<1x2x1x16xf32> to vector<2x16xf32>
    %47 = vector.shape_cast %44 : vector<2x16xf32> to vector<1x2x1x16xf32>
    tpu.vector_store %arg3[%c0_46, %c0_47, %c7, %c0_48], %47 {strides = array<i32>} : memref<1x2x8x16xf32, #tpu.memory_space<vmem>>, vector<1x2x1x16xf32>,
    return
  }
  func.func @transform_0(%arg0: i32, %arg1: i32) -> (i32, i32, i32, i32) {
    %c0_i32 = arith.constant 0 : i32
    %c0_i32_0 = arith.constant 0 : i32
    %c0_i32_1 = arith.constant 0 : i32
    return %arg0, %arg1, %c0_i32, %c0_i32_0 : i32, i32, i32, i32
  }
  func.func @transform_1(%arg0: i32, %arg1: i32) -> (i32, i32, i32, i32) {
    %c0_i32 = arith.constant 0 : i32
    %c0_i32_0 = arith.constant 0 : i32
    %c0_i32_1 = arith.constant 0 : i32
    return %arg0, %arg1, %c0_i32, %c0_i32_0 : i32, i32, i32, i32
  }
}

</mosaic_0001>

<llo_original>
// kernel: tpu_custom_call.1
$region0: #{tpu_custom_call.1}
  #allocation0 [shape = 'u32[]', space=smem, size = 0x4, offset = 0x4, fixed_abs, tag = 'smem constant byte address 0x4 - core index']
  #allocation1 [shape = 'u32[72,128]{1,0:T(1,128)}', space=vmem, size = 0x9000, scoped, tag = 'internal scratch']
  %s0 = inlined_call_operand.hbm [shape: f32[2,2,2,64], index: 0, kind: input, shape index: {}]
  %s1 = inlined_call_operand.hbm [shape: f32[2,2,8,16], index: 1, kind: output, shape index: {}]
  %s2 = sld [smem:[#allocation0]]
  $region41: #{tpu_custom_call.1} parent=0
    _
  %s4 = ssub.s32 1, %s2
  %s5 = scalar_select 0, %s4, %s2
  $region1: #{tpu_custom_call.1} parent=0
    #allocation2 [shape = 'u8[4096]{0}', space=vmem, size = 0x1000, scoped, tag = 'input window, operand 0']
    #allocation3 [shape = 's32[2]{0}', space=sflag, size = 0x8, scoped, tag = 'scoped memory for tpu_custom_call.1']
    #allocation4 [shape = 's32[2]{0}', space=sflag, size = 0x8, scoped, tag = 'scoped memory for tpu_custom_call.1']
    #allocation5 [shape = 'u8[16384]{0}', space=vmem, size = 0x4000, scoped, tag = 'output window, operand 0']
    %6 = vsyncpa [#allocation3], 0
    %s7 = scalar_lea.sflag [#allocation3], 1
    %8 = vsyncpa %s7, 0
    %9 = vsyncpa [#allocation4], 0
    %s10 = scalar_lea.sflag [#allocation4], 1
    %11 = vsyncpa %s10, 0
    loop: start=0, step=1, limit=4
    $region2: #{tpu_custom_call.1} parent=1 // loop_pre_header
      _
    $region3: #{tpu_custom_call.1} parent=1 // loop_header
      %s13 = sphi 0, %s17
      %p14 = scmp.ge.s32.totalorder %s13, 4
      %s20 = sphi 0, %s32
      %s21 = sphi 0, %s28
      %s22 = sphi 0, %s20
      %s23 = sphi 0, %s21
      %s24 = sphi 0, %s22
      %s25 = sphi 0, %s23
      %s37 = sphi 0, %s39
      %s40 = sphi 0, %s37
      %s41 = sphi 0, %s40
      %s57 = sphi 0, %s41
      %s65 = sphi 0, %s67
      %s68 = sphi 0, %s65
      %s69 = sphi 0, %s68
      %s85 = sphi 0, %s69
    $region4: #{tpu_custom_call.1} parent=1 // loop_header_branch
      %16 = sbr.rel (%p14) target = $region8
    $region5: #{tpu_custom_call.1} parent=1 // loop_body
      %s18 = ssub.s32 %s13, 1
      %s19 = ssub.s32 %s13, 2
      %s26 = sadd.s32 1, %s21
      %p27 = scmp.ge.s32.totalorder %s26, 1
      %s28 = scalar_select %p27, 0, %s26
      %s29 = sadd.s32 1, %s20
      %s30 = scalar_select %p27, %s29, %s20
      %p31 = scmp.ge.s32.totalorder %s30, 2
      %s32 = scalar_select %p31, 0, %s30
      %s33 = ssub.s32 %s20, %s32
      %s34 = ssub.s32 %s21, %s28
      %s35 = sor.u32 %s33, %s34
      %p36 = scmp.eq.s32.totalorder %s35, 0
      %s38 = sadd.s32 %s37, 1
      %s39 = scalar_select %p36, %s37, %s38
      %p42 = pneg %p36
      %p43 = scmp.eq.s32.totalorder %s13, 1
      %p44 = por %p42, %p43
      %p45 = scmp.ne.s32.totalorder %s37, %s40
      %p46 = scmp.eq.s32.totalorder %s13, 0
      %p47 = por %p45, %p46
      %p48 = scmp.ne.s32.totalorder %s37, %s40
      %p49 = scmp.eq.s32.totalorder %s18, 1
      %p50 = por %p48, %p49
      %p51 = scmp.ne.s32.totalorder %s40, %s41
      %p52 = scmp.eq.s32.totalorder %s18, 0
      %p53 = por %p51, %p52
      %p54 = scmp.ne.s32.totalorder %s40, %s41
      %p55 = scmp.eq.s32.totalorder %s19, 1
      %p56 = por %p54, %p55
      %p58 = scmp.ne.s32.totalorder %s41, %s57
      %p59 = scmp.eq.s32.totalorder %s19, 0
      %p60 = por %p58, %p59
      %s61 = ssub.s32 %s20, %s32
      %s62 = ssub.s32 %s21, %s28
      %s63 = sor.u32 %s61, %s62
      %p64 = scmp.eq.s32.totalorder %s63, 0
      %s66 = sadd.s32 %s65, 1
      %s67 = scalar_select %p64, %s65, %s66
      %p70 = pneg %p64
      %p71 = scmp.eq.s32.totalorder %s13, 1
      %p72 = por %p70, %p71
      %p73 = scmp.ne.s32.totalorder %s65, %s68
      %p74 = scmp.eq.s32.totalorder %s13, 0
      %p75 = por %p73, %p74
      %p76 = scmp.ne.s32.totalorder %s65, %s68
      %p77 = scmp.eq.s32.totalorder %s18, 1
      %p78 = por %p76, %p77
      %p79 = scmp.ne.s32.totalorder %s68, %s69
      %p80 = scmp.eq.s32.totalorder %s18, 0
      %p81 = por %p79, %p80
      %p82 = scmp.ne.s32.totalorder %s68, %s69
      %p83 = scmp.eq.s32.totalorder %s19, 1
      %p84 = por %p82, %p83
      %p86 = scmp.ne.s32.totalorder %s69, %s85
      %p87 = scmp.eq.s32.totalorder %s19, 0
      %p88 = por %p86, %p87
      %p89 = scmp.le.s32.totalorder 1, %s13
      %p90 = scmp.lt.s32.totalorder %s13, 3
      %p91 = pnand %p89, %p90
      %p92 = pneg %p91
      // Predicated region
      $region9: #{tpu_custom_call.1} parent=5 // pred_check
        _
      $region10: #{tpu_custom_call.1} parent=5 // pred_check_branch
        %94 = sbr.rel (%p91) target = $region12
      $region11: #{tpu_custom_call.1} parent=5 // pred_region
        %s95 = ssub.s32 %s13, 1
      $region12: #{tpu_custom_call.1} parent=5 // pred_fallthru
        _
      %p96 = scmp.lt.s32.totalorder %s13, 2
      // Predicated region
      $region13: #{tpu_custom_call.1} parent=5 // pred_check
        %p97 = pneg %p96
      $region14: #{tpu_custom_call.1} parent=5 // pred_check_branch
        %99 = sbr.rel (%p97) target = $region16
      $region15: #{tpu_custom_call.1} parent=5 // pred_region
        // Predicated region
        $region17: #{tpu_custom_call.1} parent=15 // pred_check
          %p100 = pneg %p47
        $region18: #{tpu_custom_call.1} parent=15 // pred_check_branch
          %102 = sbr.rel (%p100) target = $region20
        $region19: #{tpu_custom_call.1} parent=15 // pred_region
          %s103 = sand.u32 %s37, 1
          %s104 = scalar_lea.sflag [#allocation3], %s103
          %s105 = sand.u32 %s37, 1
          %s106 = smul.addr %s105, 4
          %s107 = scalar_lea.vmem [#allocation2], %s106
          %s108 = smul.u32 2, %s21
          %110 = vsyncadd %s104, 0
          %s111 = smul.addr %s20, 2
          %s112 = sadd.s32 %s108, %s111
          %s113 = smul.addr %s112, 2
          %s114 = scalar_lea.hbm %s0, %s113
          %s115 = sshll.u32 %s114, 4
          %s116 = int_to_ptr.hbm [resolvable:$true] %s115
          %s117 = sshll.u32 %s107, 4
          %s118 = int_to_ptr.vmem [resolvable:$true] %s117
          %123 = dma.hbm_to_vmem [thread:$0]  %s116, 64, %s118, %s104, 32, 32, 2
        $region20: #{tpu_custom_call.1} parent=15 // pred_fallthru
          _
      $region16: #{tpu_custom_call.1} parent=5 // pred_fallthru
        _
      %p124 = scmp.le.s32.totalorder 1, %s13
      %p125 = scmp.lt.s32.totalorder %s13, 3
      %p126 = pnand %p124, %p125
      %p127 = pneg %p126
      // Predicated region
      $region21: #{tpu_custom_call.1} parent=5 // pred_check
        _
      $region22: #{tpu_custom_call.1} parent=5 // pred_check_branch
        %129 = sbr.rel (%p126) target = $region24
      $region23: #{tpu_custom_call.1} parent=5 // pred_region
        %s130 = ssub.s32 %s13, 1
        %s131 = sand.u32 %s40, 1
        %s132 = scalar_lea.sflag [#allocation3], %s131
        %s133 = sand.u32 %s40, 1
        %s134 = smul.addr %s133, 4
        %s135 = scalar_lea.vmem [#allocation2], %s134
        // Predicated region
        $region25: #{tpu_custom_call.1} parent=23 // pred_check
          %p136 = pneg %p53
        $region26: #{tpu_custom_call.1} parent=23 // pred_check_branch
          %138 = sbr.rel (%p136) target = $region28
        $region27: #{tpu_custom_call.1} parent=23 // pred_region
          %140 = dma.done %s132, 64
        $region28: #{tpu_custom_call.1} parent=23 // pred_fallthru
          _
        %s141 = sand.u32 %s40, 1
        %s142 = scalar_lea.sflag [#allocation3], %s141
        %s143 = sand.u32 %s40, 1
        %s144 = smul.addr %s143, 4
        %s145 = scalar_lea.vmem [#allocation2], %s144
        %p146 = pneg %p53
        %p147 = pneg %p50
        %p148 = pneg %p81
        %p149 = pneg %p78
        %s150 = sand.u32 %s68, 1
        %s151 = scalar_lea.sflag [#allocation4], %s150
        %s152 = sand.u32 %s68, 1
        %s153 = smul.addr %s152, 16
        %s154 = scalar_lea.vmem [#allocation5], %s153
        %s155 = smul.u32 2, %s23
        %s156 = smul.u32 2, %s23
        %v157 = vld [vmem:[%s135] sm:$0x3]
        %v159 = vunpack.c.l.s4 1934713408
        %v160 = vunpack.c.0.s8 %v159
        %v161 = vperm.slane %v157, %v160
        %v162 = vrot.slane %v161, 4
        %vm163 = vcmask 1047556
        %v164 = vsel %vm163, 0.0, %v162
        %v165 = vld [vmem:[%s135 + $0x2] sm:$0x3]
        %v167 = vunpack.c.l.s4 1934713408
        %v168 = vunpack.c.0.s8 %v167
        %v169 = vperm.slane %v165, %v168
        %v170 = vrot.slane %v169, 4
        %v171 = vsel %vm163, 0.0, %v170
        %174 = vrot.lane.b32.xlu0 %v164, 8
        %v175 = vpop.permute.xlu0 %174
        %176 = vrot.lane.b32.xlu0 %v171, 8
        %v177 = vpop.permute.xlu0 %176
        %vm180 = vcmask 64512
        %v181 = vsel %vm180, %v161, %v175
        %v182 = vsel %vm180, %v169, %v177
        %vm183 = vcmask 122880
        %184 = vst.msk [vmem:[%s154] sm:$0x1] %vm183, %v181
        %185 = vst.msk [vmem:[%s154 + $0x8] sm:$0x1] %vm183, %v182
        %v186 = vld [vmem:[%s135] sm:$0x3]
        %v187 = vld [vmem:[%s135 + $0x2] sm:$0x3]
        %190 = vrot.lane.b32.xlu0 %v186, 120
        %v191 = vpop.permute.xlu0 %190
        %192 = vrot.lane.b32.xlu0 %v187, 120
        %v193 = vpop.permute.xlu0 %192
        %v196 = vunpack.c.l.s4 1934713408
        %v197 = vunpack.c.0.s8 %v196
        %v198 = vperm.slane %v191, %v197
        %v199 = vrot.slane %v198, 4
        %v200 = vsel %vm163, 0.0, %v199
        %v203 = vunpack.c.l.s4 1934713408
        %v204 = vunpack.c.0.s8 %v203
        %v205 = vperm.slane %v193, %v204
        %v206 = vrot.slane %v205, 4
        %v207 = vsel %vm163, 0.0, %v206
        %210 = vrot.lane.b32.xlu0 %v200, 8
        %v211 = vpop.permute.xlu0 %210
        %212 = vrot.lane.b32.xlu0 %v207, 8
        %v213 = vpop.permute.xlu0 %212
        %v216 = vsel %vm180, %v198, %v211
        %v217 = vsel %vm180, %v205, %v213
        %218 = vst.msk [vmem:[%s154 + $0x1] sm:$0x1] %vm183, %v216
        %219 = vst.msk [vmem:[%s154 + $0x9] sm:$0x1] %vm183, %v217
        %v220 = vld [vmem:[%s135] sm:$0x3]
        %v221 = vld [vmem:[%s135 + $0x2] sm:$0x3]
        %224 = vrot.lane.b32.xlu0 %v220, 112
        %v225 = vpop.permute.xlu0 %224
        %226 = vrot.lane.b32.xlu0 %v221, 112
        %v227 = vpop.permute.xlu0 %226
        %v230 = vunpack.c.l.s4 1934713408
        %v231 = vunpack.c.0.s8 %v230
        %v232 = vperm.slane %v225, %v231
        %v233 = vrot.slane %v232, 4
        %v234 = vsel %vm163, 0.0, %v233
        %v237 = vunpack.c.l.s4 1934713408
        %v238 = vunpack.c.0.s8 %v237
        %v239 = vperm.slane %v227, %v238
        %v240 = vrot.slane %v239, 4
        %v241 = vsel %vm163, 0.0, %v240
        %244 = vrot.lane.b32.xlu0 %v234, 8
        %v245 = vpop.permute.xlu0 %244
        %246 = vrot.lane.b32.xlu0 %v241, 8
        %v247 = vpop.permute.xlu0 %246
        %v250 = vsel %vm180, %v232, %v245
        %v251 = vsel %vm180, %v239, %v247
        %252 = vst.msk [vmem:[%s154 + $0x2] sm:$0x1] %vm183, %v250
        %253 = vst.msk [vmem:[%s154 + $0xa] sm:$0x1] %vm183, %v251
        %v254 = vld [vmem:[%s135] sm:$0x3]
        %v255 = vld [vmem:[%s135 + $0x2] sm:$0x3]
        %258 = vrot.lane.b32.xlu0 %v254, 104
        %v259 = vpop.permute.xlu0 %258
        %260 = vrot.lane.b32.xlu0 %v255, 104
        %v261 = vpop.permute.xlu0 %260
        %v264 = vunpack.c.l.s4 1934713408
        %v265 = vunpack.c.0.s8 %v264
        %v266 = vperm.slane %v259, %v265
        %v267 = vrot.slane %v266, 4
        %v268 = vsel %vm163, 0.0, %v267
        %v271 = vunpack.c.l.s4 1934713408
        %v272 = vunpack.c.0.s8 %v271
        %v273 = vperm.slane %v261, %v272
        %v274 = vrot.slane %v273, 4
        %v275 = vsel %vm163, 0.0, %v274
        %278 = vrot.lane.b32.xlu0 %v268, 8
        %v279 = vpop.permute.xlu0 %278
        %280 = vrot.lane.b32.xlu0 %v275, 8
        %v281 = vpop.permute.xlu0 %280
        %v284 = vsel %vm180, %v266, %v279
        %v285 = vsel %vm180, %v273, %v281
        %286 = vst.msk [vmem:[%s154 + $0x3] sm:$0x1] %vm183, %v284
        %287 = vst.msk [vmem:[%s154 + $0xb] sm:$0x1] %vm183, %v285
        %v288 = vld [vmem:[%s135] sm:$0x3]
        %v289 = vld [vmem:[%s135 + $0x2] sm:$0x3]
        %292 = vrot.lane.b32.xlu0 %v288, 96
        %v293 = vpop.permute.xlu0 %292
        %294 = vrot.lane.b32.xlu0 %v289, 96
        %v295 = vpop.permute.xlu0 %294
        %v298 = vunpack.c.l.s4 1934713408
        %v299 = vunpack.c.0.s8 %v298
        %v300 = vperm.slane %v293, %v299
        %v301 = vrot.slane %v300, 4
        %v302 = vsel %vm163, 0.0, %v301
        %v305 = vunpack.c.l.s4 1934713408
        %v306 = vunpack.c.0.s8 %v305
        %v307 = vperm.slane %v295, %v306
        %v308 = vrot.slane %v307, 4
        %v309 = vsel %vm163, 0.0, %v308
        %312 = vrot.lane.b32.xlu0 %v302, 8
        %v313 = vpop.permute.xlu0 %312
        %314 = vrot.lane.b32.xlu0 %v309, 8
        %v315 = vpop.permute.xlu0 %314
        %v318 = vsel %vm180, %v300, %v313
        %v319 = vsel %vm180, %v307, %v315
        %320 = vst.msk [vmem:[%s154 + $0x4] sm:$0x1] %vm183, %v318
        %321 = vst.msk [vmem:[%s154 + $0xc] sm:$0x1] %vm183, %v319
        %v322 = vld [vmem:[%s135] sm:$0x3]
        %v323 = vld [vmem:[%s135 + $0x2] sm:$0x3]
        %326 = vrot.lane.b32.xlu0 %v322, 88
        %v327 = vpop.permute.xlu0 %326
        %328 = vrot.lane.b32.xlu0 %v323, 88
        %v329 = vpop.permute.xlu0 %328
        %v332 = vunpack.c.l.s4 1934713408
        %v333 = vunpack.c.0.s8 %v332
        %v334 = vperm.slane %v327, %v333
        %v335 = vrot.slane %v334, 4
        %v336 = vsel %vm163, 0.0, %v335
        %v339 = vunpack.c.l.s4 1934713408
        %v340 = vunpack.c.0.s8 %v339
        %v341 = vperm.slane %v329, %v340
        %v342 = vrot.slane %v341, 4
        %v343 = vsel %vm163, 0.0, %v342
        %346 = vrot.lane.b32.xlu0 %v336, 8
        %v347 = vpop.permute.xlu0 %346
        %348 = vrot.lane.b32.xlu0 %v343, 8
        %v349 = vpop.permute.xlu0 %348
        %v352 = vsel %vm180, %v334, %v347
        %v353 = vsel %vm180, %v341, %v349
        %354 = vst.msk [vmem:[%s154 + $0x5] sm:$0x1] %vm183, %v352
        %355 = vst.msk [vmem:[%s154 + $0xd] sm:$0x1] %vm183, %v353
        %v356 = vld [vmem:[%s135] sm:$0x3]
        %v357 = vld [vmem:[%s135 + $0x2] sm:$0x3]
        %360 = vrot.lane.b32.xlu0 %v356, 80
        %v361 = vpop.permute.xlu0 %360
        %362 = vrot.lane.b32.xlu0 %v357, 80
        %v363 = vpop.permute.xlu0 %362
        %v366 = vunpack.c.l.s4 1934713408
        %v367 = vunpack.c.0.s8 %v366
        %v368 = vperm.slane %v361, %v367
        %v369 = vrot.slane %v368, 4
        %v370 = vsel %vm163, 0.0, %v369
        %v373 = vunpack.c.l.s4 1934713408
        %v374 = vunpack.c.0.s8 %v373
        %v375 = vperm.slane %v363, %v374
        %v376 = vrot.slane %v375, 4
        %v377 = vsel %vm163, 0.0, %v376
        %380 = vrot.lane.b32.xlu0 %v370, 8
        %v381 = vpop.permute.xlu0 %380
        %382 = vrot.lane.b32.xlu0 %v377, 8
        %v383 = vpop.permute.xlu0 %382
        %v386 = vsel %vm180, %v368, %v381
        %v387 = vsel %vm180, %v375, %v383
        %388 = vst.msk [vmem:[%s154 + $0x6] sm:$0x1] %vm183, %v386
        %389 = vst.msk [vmem:[%s154 + $0xe] sm:$0x1] %vm183, %v387
        %v390 = vld [vmem:[%s135] sm:$0x3]
        %v391 = vld [vmem:[%s135 + $0x2] sm:$0x3]
        %394 = vrot.lane.b32.xlu0 %v390, 72
        %v395 = vpop.permute.xlu0 %394
        %396 = vrot.lane.b32.xlu0 %v391, 72
        %v397 = vpop.permute.xlu0 %396
        %v400 = vunpack.c.l.s4 1934713408
        %v401 = vunpack.c.0.s8 %v400
        %v402 = vperm.slane %v395, %v401
        %v403 = vrot.slane %v402, 4
        %v404 = vsel %vm163, 0.0, %v403
        %v407 = vunpack.c.l.s4 1934713408
        %v408 = vunpack.c.0.s8 %v407
        %v409 = vperm.slane %v397, %v408
        %v410 = vrot.slane %v409, 4
        %v411 = vsel %vm163, 0.0, %v410
        %414 = vrot.lane.b32.xlu0 %v404, 8
        %v415 = vpop.permute.xlu0 %414
        %416 = vrot.lane.b32.xlu0 %v411, 8
        %v417 = vpop.permute.xlu0 %416
        %v420 = vsel %vm180, %v402, %v415
        %v421 = vsel %vm180, %v409, %v417
        %422 = vst.msk [vmem:[%s154 + $0x7] sm:$0x1] %vm183, %v420
        %423 = vst.msk [vmem:[%s154 + $0xf] sm:$0x1] %vm183, %v421
        %s424 = sand.u32 %s68, 1
        %s425 = scalar_lea.sflag [#allocation4], %s424
        %s426 = sand.u32 %s68, 1
        %s427 = smul.addr %s426, 16
        %s428 = scalar_lea.vmem [#allocation5], %s427
        // Predicated region
        $region29: #{tpu_custom_call.1} parent=23 // pred_check
          %p429 = pneg %p78
        $region30: #{tpu_custom_call.1} parent=23 // pred_check_branch
          %431 = sbr.rel (%p429) target = $region32
        $region31: #{tpu_custom_call.1} parent=23 // pred_region
          %s432 = smul.u32 2, %s23
          %434 = vsyncadd %s425, 0
          %s435 = smul.addr %s22, 2
          %s436 = sadd.s32 %s432, %s435
          %s437 = smul.addr %s436, 8
          %s438 = scalar_lea.hbm %s1, %s437
          %s439 = sshll.u32 %s428, 4
          %s440 = int_to_ptr.vmem [resolvable:$true] %s439
          %s441 = sshll.u32 %s438, 4
          %s442 = int_to_ptr.hbm [resolvable:$true] %s441
          %447 = dma.vmem_to_hbm [thread:$0]  %s440, 256, %s442, %s425, 128, 128, 8
        $region32: #{tpu_custom_call.1} parent=23 // pred_fallthru
          _
      $region24: #{tpu_custom_call.1} parent=5 // pred_fallthru
        _
      %p448 = scmp.le.s32.totalorder 2, %s13
      // Predicated region
      $region33: #{tpu_custom_call.1} parent=5 // pred_check
        %p449 = pneg %p448
      $region34: #{tpu_custom_call.1} parent=5 // pred_check_branch
        %451 = sbr.rel (%p449) target = $region36
      $region35: #{tpu_custom_call.1} parent=5 // pred_region
        %s452 = ssub.s32 %s13, 2
        // Predicated region
        $region37: #{tpu_custom_call.1} parent=35 // pred_check
          %p453 = pneg %p84
        $region38: #{tpu_custom_call.1} parent=35 // pred_check_branch
          %455 = sbr.rel (%p453) target = $region40
        $region39: #{tpu_custom_call.1} parent=35 // pred_region
          %s456 = sand.u32 %s69, 1
          %s457 = scalar_lea.sflag [#allocation4], %s456
          %s458 = sand.u32 %s69, 1
          %s459 = smul.addr %s458, 16
          %s460 = scalar_lea.vmem [#allocation5], %s459
          %462 = dma.done %s457, 256
        $region40: #{tpu_custom_call.1} parent=35 // pred_fallthru
          _
      $region36: #{tpu_custom_call.1} parent=5 // pred_fallthru
        _
    $region6: #{tpu_custom_call.1} parent=1 // loop_footer
      %s17 = sadd.s32 1, %s13
    $region7: #{tpu_custom_call.1} parent=1 // loop_footer_branch
      %12 = sbr.rel target = $region3
    $region8: #{tpu_custom_call.1} parent=1 // loop_exit
      _
    %463 = vsyncpa [#allocation3], 1
    %s464 = scalar_lea.sflag [#allocation3], 1
    %465 = vsyncpa %s464, 1
    %466 = vsyncpa [#allocation4], 1
    %s467 = scalar_lea.sflag [#allocation4], 1
    %468 = vsyncpa %s467, 1

</llo_original>
